<compile_context>
chip_gen: v6e
topology: v6e:2x2x1
jax: 0.10.0
libtpu: 0.0.40
codegen_flags: <defaults>
</compile_context>

<pallas_src>
import functools

import jax
import jax.numpy as jnp
from jax import lax
from jax.experimental import pallas as pl
from jax.experimental.pallas import tpu as pltpu


def _vmem_budgets():
    """Generation-aware (vmem_limit_bytes, M-tile budget) in bytes."""
    cap = 64 * 1024 * 1024  # conservative default = v7x per-TensorCore VMEM
    try:
        info = pltpu.get_tpu_info()
        c = getattr(info, "vmem_capacity_bytes", None)
        if c:
            cap = int(c)
    except Exception:
        pass
    if cap >= 100 * 1024 * 1024:
        # v5e / v6e: 128 MiB physical VMEM -> run big tiles.
        return 96 * 1024 * 1024, 64 * 1024 * 1024
    # v7x (64 MiB physical per TC) or unknown: stay well inside it.
    return 44 * 1024 * 1024, 28 * 1024 * 1024


def _pick_batch_tile(B, S, D, itemsize, tile_budget):
    """Batch tile: multiple of 8 (sublane rule), sized so the double-buffered M
    tile (+ small f32 temporaries) fits `tile_budget`, while keeping at least
    2 grid steps (megacore split / DMA-compute overlap) whenever B allows it."""
    if B <= 8:
        return B  # block == full array dim satisfies the (8,128) constraint
    min_steps = 4 if B >= 32 else 2
    per_row = S * D * 2 * itemsize + (S + D) * 24  # 2x-buffered M row + f32 temps
    tb = tile_budget // max(per_row, 1)
    tb = min(tb, max(8, B // min_steps))           # keep >= min_steps grid steps
    tb = max(8, (tb // 8) * 8)
    return int(min(tb, B))


def _matching_attention_kernel(m_ref, x_ref, w_ref, pool_ref, alpha_ref,
                               scores_ref, *, chunk):
    """m_ref: (S, TB, D) native layout, x_ref: (TB, C), w_ref: (D, C)
       -> pool_ref: (TB, D), alpha_ref: (TB, S); scores_ref: (S, TB) f32 scratch."""
    S, TB, D = m_ref.shape

    # x_ = self.transform(x): the only dense matmul -> MXU, f32 accumulate.
    # W is consumed in its native nn.Linear (mem_dim, cand_dim) layout.
    xt = lax.dot_general(x_ref[...], w_ref[...],
                         dimension_numbers=(((1,), (1,)), ((), ())),
                         preferred_element_type=jnp.float32)          # (TB, D) f32

    # Hoisted broadcast of x_ for the chunked score pass.
    xt_b = jnp.broadcast_to(xt[None, :, :], (chunk, TB, D))           # (chunk, TB, D)

    # Pass 1 (chunked over S): scores[s, b] = sum_d M[s, b, d] * x_[b, d].
    # Chunking keeps the f32 product temporaries in vregs instead of spilling an
    # (S, TB, D) f32 copy of the whole tile to VMEM.
    for s0 in range(0, S, chunk):
        sz = min(chunk, S - s0)
        m_chunk = m_ref[pl.ds(s0, sz), :, :]                          # (sz, TB, D)
        xb = xt_b if sz == chunk else xt_b[:sz]
        scores_ref[pl.ds(s0, sz), :] = jnp.sum(m_chunk * xb, axis=-1)

    # Softmax over the seq axis (torch dim=2), per batch column, in f32.
    scores = scores_ref[...]                                          # (S, TB)
    mx = jnp.max(scores, axis=0, keepdims=True)
    e = jnp.exp(scores - mx)
    alpha = e / jnp.sum(e, axis=0, keepdims=True)                     # (S, TB) f32

    # Pass 2 (chunked over S): pool[b, d] = sum_s alpha[s, b] * M[s, b, d].
    pool = jnp.zeros((TB, D), jnp.float32)
    for s0 in range(0, S, chunk):
        sz = min(chunk, S - s0)
        m_chunk = m_ref[pl.ds(s0, sz), :, :]                          # (sz, TB, D)
        a_chunk = alpha[s0:s0 + sz, :, None]                          # (sz, TB, 1)
        pool = pool + jnp.sum(a_chunk * m_chunk, axis=0)              # (TB, D) f32

    pool_ref[...] = pool.astype(pool_ref.dtype)
    # Only the tiny (S, TB) alpha is transposed (XLU); the big M tile never is.
    alpha_ref[...] = alpha.T.astype(alpha_ref.dtype)                  # (TB, S)


def matching_attention_general(M, x, W):
    """Pallas forward for MatchingAttention(att_type='general').

    Args:
      M: (seq_len, batch, mem_dim)  -- memory, PyTorch axis convention (used as-is).
      x: (batch, cand_dim)          -- candidate.
      W: (mem_dim, cand_dim)        -- nn.Linear(cand_dim, mem_dim, bias=False).weight.
    Returns:
      attn_pool: (batch, mem_dim)
      alpha    : (batch, 1, seq_len), float32
    """
    S, B, D = M.shape
    C = x.shape[1]
    assert W.shape == (D, C)

    vmem_limit, tile_budget = _vmem_budgets()
    TB = _pick_batch_tile(B, S, D, jnp.dtype(M.dtype).itemsize, tile_budget)
    chunk = max(1, min(S, 8))
    grid = (pl.cdiv(B, TB),)

    kernel = functools.partial(_matching_attention_kernel, chunk=chunk)

    pool, alpha = pl.pallas_call(
        kernel,
        out_shape=(jax.ShapeDtypeStruct((B, D), M.dtype),
                   jax.ShapeDtypeStruct((B, S), jnp.float32)),
        grid=grid,
        in_specs=[
            pl.BlockSpec((S, TB, D), lambda b: (0, b, 0)),  # M, native (S,B,D) layout
            pl.BlockSpec((TB, C), lambda b: (b, 0)),        # x
            pl.BlockSpec((D, C), lambda b: (0, 0)),         # W (nn.Linear weight), resident
        ],
        out_specs=(
            pl.BlockSpec((TB, D), lambda b: (b, 0)),        # attn_pool
            pl.BlockSpec((TB, S), lambda b: (b, 0)),        # alpha (batch-major)
        ),
        scratch_shapes=[pltpu.VMEM((S, TB), jnp.float32)],  # scores / softmax scratch
        compiler_params=pltpu.CompilerParams(
            dimension_semantics=("parallel",),              # v7x: split batch over 2 TCs
            vmem_limit_bytes=vmem_limit,
        ),
    )(M, x, W)

    return pool, alpha.reshape(B, 1, S)


def _reference(M, x, W):
    """Pure-JAX reference of the PyTorch 'general' forward."""
    xt = x @ W.T                          # (B, D)
    Mb = jnp.transpose(M, (1, 0, 2))      # (B, S, D)
    scores = jnp.einsum('bd,bsd->bs', xt, Mb)
    alpha = jax.nn.softmax(scores, axis=-1)
    pool = jnp.einsum('bs,bsd->bd', alpha, Mb)
    return pool, alpha.reshape(alpha.shape[0], 1, alpha.shape[1])


if __name__ == "__main__":
    # (seq_len, batch, mem_dim, cand_dim): one lane-dense config, one small ragged
    # config, and one with B % TB != 0 to exercise multi-step grids + padded blocks.
    configs = [
        (16, 8, 128, 64),
        (8, 2, 32, 48),
        (24, 20, 128, 64),
    ]

    key = jax.random.PRNGKey(0)
    for (S, B, D, C) in configs:
        key, k_m, k_x, k_w = jax.random.split(key, 4)
        M = jax.random.normal(k_m, (S, B, D), dtype=jnp.float32)
        x = jax.random.normal(k_x, (B, C), dtype=jnp.float32)
        # Deterministic init matching nn.Linear(cand_dim, mem_dim, bias=False) weight shape.
        bound = 1.0 / (C ** 0.5)
        W = jax.random.uniform(k_w, (D, C), dtype=jnp.float32, minval=-bound, maxval=bound)

        attn_pool, alpha = matching_attention_general(M, x, W)
        attn_pool = jax.block_until_ready(attn_pool)
        alpha = jax.block_until_ready(alpha)

        ref_pool, ref_alpha = _reference(M, x, W)
        assert attn_pool.shape == (B, D)
        assert alpha.shape == (B, 1, S)
        assert jnp.allclose(attn_pool, ref_pool, atol=1e-4, rtol=1e-4), (
            f"pool mismatch {float(jnp.max(jnp.abs(attn_pool - ref_pool)))}")
        assert jnp.allclose(alpha, ref_alpha, atol=1e-4, rtol=1e-4), (
            f"alpha mismatch {float(jnp.max(jnp.abs(alpha - ref_alpha)))}")

    print("KERNEL_OK")
</pallas_src>

<mosaic_0001>
module attributes {stable_mosaic.version = 11 : i64} {
  func.func @_matching_attention_kernel(%arg0: i32, %arg1: memref<16x8x128xf32, #tpu.memory_space<vmem>>, %arg2: memref<8x64xf32, #tpu.memory_space<vmem>>, %arg3: memref<128x64xf32, #tpu.memory_space<vmem>>, %arg4: memref<8x128xf32, #tpu.memory_space<vmem>>, %arg5: memref<8x16xf32, #tpu.memory_space<vmem>>, %arg6: memref<16x8xf32, #tpu.memory_space<vmem>>) attributes {dimension_semantics = [#tpu.dimension_semantics<parallel>], iteration_bounds = array<i64: 1>, scalar_prefetch = 0 : i64, scratch_operands = 1 : i64, tpu.core_type = #tpu.core_type<tc>, window_params = [{transform_indices = @transform_0, window_bounds = array<i64: 16, 8, 128>}, {transform_indices = @transform_1, window_bounds = array<i64: 8, 64>}, {pipeline_mode = #tpu.pipeline_mode<synchronous>, transform_indices = @transform_2, window_bounds = array<i64: 128, 64>}, {transform_indices = @transform_3, window_bounds = array<i64: 8, 128>}, {transform_indices = @transform_4, window_bounds = array<i64: 8, 16>}]} {
    %c0 = arith.constant 0 : index
    %c0_0 = arith.constant 0 : index
    %0 = vector.load %arg2[%c0, %c0_0] : memref<8x64xf32, #tpu.memory_space<vmem>>, vector<8x64xf32>
    %c0_1 = arith.constant 0 : index
    %c0_2 = arith.constant 0 : index
    %1 = vector.load %arg3[%c0_1, %c0_2] : memref<128x64xf32, #tpu.memory_space<vmem>>, vector<128x64xf32>
    %cst = arith.constant dense<0.000000e+00> : vector<8x128xf32>
    %2 = tpu.matmul %0, %1, %cst {dimension_numbers = #tpu.dot_dimension_numbers<[1], [1], [0], [0], [0, 0, 1, 0], [], []>} : vector<8x64xf32>, vector<128x64xf32>, vector<8x128xf32> -> vector<8x128xf32>
    %3 = vector.shape_cast %2 : vector<8x128xf32> to vector<1x8x128xf32>
    %4 = vector.shape_cast %3 : vector<1x8x128xf32> to vector<1x8x128xf32>
    %5 = vector.broadcast %4 : vector<1x8x128xf32> to vector<8x8x128xf32>
    %c0_3 = arith.constant 0 : index
    %c0_4 = arith.constant 0 : index
    %c0_5 = arith.constant 0 : index
    %6 = vector.load %arg1[%c0_3, %c0_4, %c0_5] : memref<16x8x128xf32, #tpu.memory_space<vmem>>, vector<8x8x128xf32>
    %7 = arith.mulf %6, %5 : vector<8x8x128xf32>
    %cst_6 = arith.constant dense<0.000000e+00> : vector<8x8xf32>
    %8 = vector.multi_reduction <add>, %7, %cst_6 [2] : vector<8x8x128xf32> to vector<8x8xf32>
    %c0_7 = arith.constant 0 : index
    %c0_8 = arith.constant 0 : index
    %9 = vector.load %arg6[%c0_7, %c0_8] : memref<16x8xf32, #tpu.memory_space<vmem>>, vector<8x8xf32>
    tpu.vector_store %arg6[%c0_7, %c0_8], %8 {strides = array<i32>} : memref<16x8xf32, #tpu.memory_space<vmem>>, vector<8x8xf32>,
    %c8 = arith.constant 8 : index
    %c0_9 = arith.constant 0 : index
    %c0_10 = arith.constant 0 : index
    %10 = vector.load %arg1[%c8, %c0_9, %c0_10] : memref<16x8x128xf32, #tpu.memory_space<vmem>>, vector<8x8x128xf32>
    %11 = arith.mulf %10, %5 : vector<8x8x128xf32>
    %cst_11 = arith.constant dense<0.000000e+00> : vector<8x8xf32>
    %12 = vector.multi_reduction <add>, %11, %cst_11 [2] : vector<8x8x128xf32> to vector<8x8xf32>
    %c8_12 = arith.constant 8 : index
    %c0_13 = arith.constant 0 : index
    %13 = vector.load %arg6[%c8_12, %c0_13] : memref<16x8xf32, #tpu.memory_space<vmem>>, vector<8x8xf32>
    tpu.vector_store %arg6[%c8_12, %c0_13], %12 {strides = array<i32>} : memref<16x8xf32, #tpu.memory_space<vmem>>, vector<8x8xf32>,
    %c0_14 = arith.constant 0 : index
    %c0_15 = arith.constant 0 : index
    %14 = vector.load %arg6[%c0_14, %c0_15] : memref<16x8xf32, #tpu.memory_space<vmem>>, vector<16x8xf32>
    %cst_16 = arith.constant dense<0xFF800000> : vector<8xf32>
    %15 = vector.multi_reduction <maximumf>, %14, %cst_16 [0] : vector<16x8xf32> to vector<8xf32>
    %16 = vector.shape_cast %15 : vector<8xf32> to vector<1x8xf32>
    %17 = vector.broadcast %16 : vector<1x8xf32> to vector<16x8xf32>
    %18 = arith.subf %14, %17 : vector<16x8xf32>
    %19 = math.exp %18 : vector<16x8xf32>
    %cst_17 = arith.constant dense<0.000000e+00> : vector<8xf32>
    %20 = vector.multi_reduction <add>, %19, %cst_17 [0] : vector<16x8xf32> to vector<8xf32>
    %21 = vector.shape_cast %20 : vector<8xf32> to vector<1x8xf32>
    %22 = vector.broadcast %21 : vector<1x8xf32> to vector<16x8xf32>
    %23 = arith.divf %19, %22 : vector<16x8xf32>
    %cst_18 = arith.constant 0.000000e+00 : f32
    %24 = vector.broadcast %cst_18 : f32 to vector<8x128xf32>
    %c0_19 = arith.constant 0 : index
    %c0_20 = arith.constant 0 : index
    %c0_21 = arith.constant 0 : index
    %25 = vector.load %arg1[%c0_19, %c0_20, %c0_21] : memref<16x8x128xf32, #tpu.memory_space<vmem>>, vector<8x8x128xf32>
    %26 = vector.extract_strided_slice %23 {offsets = [0, 0], sizes = [8, 8], strides = [1, 1]} : vector<16x8xf32> to vector<8x8xf32>
    %27 = vector.shape_cast %26 : vector<8x8xf32> to vector<8x8x1xf32>
    %28 = vector.broadcast %27 : vector<8x8x1xf32> to vector<8x8x128xf32>
    %29 = arith.mulf %28, %25 : vector<8x8x128xf32>
    %cst_22 = arith.constant dense<0.000000e+00> : vector<8x128xf32>
    %30 = vector.multi_reduction <add>, %29, %cst_22 [0] : vector<8x8x128xf32> to vector<8x128xf32>
    %31 = arith.addf %24, %30 : vector<8x128xf32>
    %c8_23 = arith.constant 8 : index
    %c0_24 = arith.constant 0 : index
    %c0_25 = arith.constant 0 : index
    %32 = vector.load %arg1[%c8_23, %c0_24, %c0_25] : memref<16x8x128xf32, #tpu.memory_space<vmem>>, vector<8x8x128xf32>
    %33 = vector.extract_strided_slice %23 {offsets = [8, 0], sizes = [8, 8], strides = [1, 1]} : vector<16x8xf32> to vector<8x8xf32>
    %34 = vector.shape_cast %33 : vector<8x8xf32> to vector<8x8x1xf32>
    %35 = vector.broadcast %34 : vector<8x8x1xf32> to vector<8x8x128xf32>
    %36 = arith.mulf %35, %32 : vector<8x8x128xf32>
    %cst_26 = arith.constant dense<0.000000e+00> : vector<8x128xf32>
    %37 = vector.multi_reduction <add>, %36, %cst_26 [0] : vector<8x8x128xf32> to vector<8x128xf32>
    %38 = arith.addf %31, %37 : vector<8x128xf32>
    %c0_27 = arith.constant 0 : index
    %c0_28 = arith.constant 0 : index
    %39 = vector.load %arg4[%c0_27, %c0_28] : memref<8x128xf32, #tpu.memory_space<vmem>>, vector<8x128xf32>
    tpu.vector_store %arg4[%c0_27, %c0_28], %38 {strides = array<i32>} : memref<8x128xf32, #tpu.memory_space<vmem>>, vector<8x128xf32>,
    %40 = tpu.transpose %23, [1, 0] : vector<16x8xf32> -> vector<8x16xf32>
    %c0_29 = arith.constant 0 : index
    %c0_30 = arith.constant 0 : index
    %41 = vector.load %arg5[%c0_29, %c0_30] : memref<8x16xf32, #tpu.memory_space<vmem>>, vector<8x16xf32>
    tpu.vector_store %arg5[%c0_29, %c0_30], %40 {strides = array<i32>} : memref<8x16xf32, #tpu.memory_space<vmem>>, vector<8x16xf32>,
    return
  }
  func.func @transform_0(%arg0: i32) -> (i32, i32, i32) {
    %c0_i32 = arith.constant 0 : i32
    %c0_i32_0 = arith.constant 0 : i32
    %c0_i32_1 = arith.constant 0 : i32
    return %c0_i32, %arg0, %c0_i32_0 : i32, i32, i32
  }
  func.func @transform_1(%arg0: i32) -> (i32, i32) {
    %c0_i32 = arith.constant 0 : i32
    %c0_i32_0 = arith.constant 0 : i32
    return %arg0, %c0_i32 : i32, i32
  }
  func.func @transform_2(%arg0: i32) -> (i32, i32) {
    %c0_i32 = arith.constant 0 : i32
    %c0_i32_0 = arith.constant 0 : i32
    %c0_i32_1 = arith.constant 0 : i32
    return %c0_i32, %c0_i32_0 : i32, i32
  }
  func.func @transform_3(%arg0: i32) -> (i32, i32) {
    %c0_i32 = arith.constant 0 : i32
    %c0_i32_0 = arith.constant 0 : i32
    return %arg0, %c0_i32 : i32, i32
  }
  func.func @transform_4(%arg0: i32) -> (i32, i32) {
    %c0_i32 = arith.constant 0 : i32
    %c0_i32_0 = arith.constant 0 : i32
    return %arg0, %c0_i32 : i32, i32
  }
}

</mosaic_0001>

<llo_original>
// kernel: tpu_custom_call.1
$region0: #{tpu_custom_call.1}
  #allocation0 [shape = 'u32[]', space=smem, size = 0x4, offset = 0x4, fixed_abs, tag = 'smem constant byte address 0x4 - core index']
  #allocation1 [shape = 'u32[144,128]{1,0:T(1,128)}', space=vmem, size = 0x12000, scoped, tag = 'internal scratch']
  #allocation2 [shape = 'f32[16,8]{1,0:T(8,128)}', space=vmem, size = 0x2000, scoped, tag = 'scratch operand']
  %s0 = inlined_call_operand.vmem [shape: f32[16,8,128], index: 0, kind: input, shape index: {}]
  %s1 = inlined_call_operand.vmem [shape: f32[8,64], index: 1, kind: input, shape index: {}]
  %s2 = inlined_call_operand.vmem [shape: f32[128,64], index: 2, kind: input, shape index: {}]
  %s3 = inlined_call_operand.hbm [shape: f32[8,128], index: 3, kind: output, shape index: {0}]
  %s4 = inlined_call_operand.hbm [shape: f32[8,16], index: 4, kind: output, shape index: {1}]
  %5 = xla_tuple %s3, %s4
  %s6 = sld [smem:[#allocation0]]
  $region30: #{tpu_custom_call.1} parent=0
    _
  %s8 = ssub.s32 1, %s6
  %s9 = scalar_select 0, %s8, %s6
  $region1: #{tpu_custom_call.1} parent=0
    #allocation3 [shape = 'u8[4096]{0}', space=vmem, size = 0x1000, scoped, tag = 'output window, operand 0, single buffered']
    #allocation4 [shape = 's32[1]{0}', space=sflag, size = 0x4, scoped, tag = 'scoped memory for tpu_custom_call.1']
    #allocation5 [shape = 'u8[4096]{0}', space=vmem, size = 0x1000, scoped, tag = 'output window, operand 1, single buffered']
    #allocation6 [shape = 's32[1]{0}', space=sflag, size = 0x4, scoped, tag = 'scoped memory for tpu_custom_call.1']
    %10 = vsyncpa [#allocation4], 0
    %11 = vsyncpa [#allocation6], 0
    // Predicated region
    $region2: #{tpu_custom_call.1} parent=1 // pred_check
      _
    $region3: #{tpu_custom_call.1} parent=1 // pred_check_branch
      %13 = sbr.rel (0) target = $region5
    $region4: #{tpu_custom_call.1} parent=1 // pred_region
      _
    $region5: #{tpu_custom_call.1} parent=1 // pred_fallthru
      _
    // Predicated region
    $region6: #{tpu_custom_call.1} parent=1 // pred_check
      _
    $region7: #{tpu_custom_call.1} parent=1 // pred_check_branch
      %15 = sbr.rel (0) target = $region9
    $region8: #{tpu_custom_call.1} parent=1 // pred_region
      _
    $region9: #{tpu_custom_call.1} parent=1 // pred_fallthru
      _
    // Predicated region
    $region10: #{tpu_custom_call.1} parent=1 // pred_check
      _
    $region11: #{tpu_custom_call.1} parent=1 // pred_check_branch
      %17 = sbr.rel (0) target = $region13
    $region12: #{tpu_custom_call.1} parent=1 // pred_region
      _
    $region13: #{tpu_custom_call.1} parent=1 // pred_fallthru
      _
    %v18 = vld [vmem:[%s1] sm:$0xff]
    %v19 = vld [vmem:[%s2] sm:$0xff]
    %v20 = vld [vmem:[%s2 + $0x8] sm:$0xff]
    %v21 = vld [vmem:[%s2 + $0x10] sm:$0xff]
    %v22 = vld [vmem:[%s2 + $0x18] sm:$0xff]
    %v23 = vld [vmem:[%s2 + $0x20] sm:$0xff]
    %v24 = vld [vmem:[%s2 + $0x28] sm:$0xff]
    %v25 = vld [vmem:[%s2 + $0x30] sm:$0xff]
    %v26 = vld [vmem:[%s2 + $0x38] sm:$0xff]
    %v27 = vld [vmem:[%s2 + $0x40] sm:$0xff]
    %v28 = vld [vmem:[%s2 + $0x48] sm:$0xff]
    %v29 = vld [vmem:[%s2 + $0x50] sm:$0xff]
    %v30 = vld [vmem:[%s2 + $0x58] sm:$0xff]
    %v31 = vld [vmem:[%s2 + $0x60] sm:$0xff]
    %v32 = vld [vmem:[%s2 + $0x68] sm:$0xff]
    %v33 = vld [vmem:[%s2 + $0x70] sm:$0xff]
    %v34 = vld [vmem:[%s2 + $0x78] sm:$0xff]
    %vm35 = vcmask 523264
    %v37 = vsel %vm35, %v18, 0
    %v40 = vsel %vm35, %v19, 0
    %v43 = vsel %vm35, %v20, 0
    %v46 = vsel %vm35, %v21, 0
    %v49 = vsel %vm35, %v22, 0
    %v52 = vsel %vm35, %v23, 0
    %v55 = vsel %vm35, %v24, 0
    %v58 = vsel %vm35, %v25, 0
    %v61 = vsel %vm35, %v26, 0
    %v64 = vsel %vm35, %v27, 0
    %v67 = vsel %vm35, %v28, 0
    %v70 = vsel %vm35, %v29, 0
    %v73 = vsel %vm35, %v30, 0
    %v76 = vsel %vm35, %v31, 0
    %v79 = vsel %vm35, %v32, 0
    %v82 = vsel %vm35, %v33, 0
    %v85 = vsel %vm35, %v34, 0
    %87 = vmatprep.subr.mxu0 0.0
    %88 = vmatpush1.xpose.msra.mxu0 %v85
    %89 = vmatprep.subr.mxu0 0.0
    %90 = vmatpush1.xpose.msra.mxu0 %v82
    %91 = vmatprep.subr.mxu0 0.0
    %92 = vmatpush1.xpose.msra.mxu0 %v79
    %93 = vmatprep.subr.mxu0 0.0
    %94 = vmatpush1.xpose.msra.mxu0 %v76
    %95 = vmatprep.subr.mxu0 0.0
    %96 = vmatpush1.xpose.msra.mxu0 %v73
    %97 = vmatprep.subr.mxu0 0.0
    %98 = vmatpush1.xpose.msra.mxu0 %v70
    %99 = vmatprep.subr.mxu0 0.0
    %100 = vmatpush1.xpose.msra.mxu0 %v67
    %101 = vmatprep.subr.mxu0 0.0
    %102 = vmatpush1.xpose.msra.mxu0 %v64
    %103 = vmatprep.subr.mxu0 0.0
    %104 = vmatpush1.xpose.msra.mxu0 %v61
    %105 = vmatprep.subr.mxu0 0.0
    %106 = vmatpush1.xpose.msra.mxu0 %v58
    %107 = vmatprep.subr.mxu0 0.0
    %108 = vmatpush1.xpose.msra.mxu0 %v55
    %109 = vmatprep.subr.mxu0 0.0
    %110 = vmatpush1.xpose.msra.mxu0 %v52
    %111 = vmatprep.subr.mxu0 0.0
    %112 = vmatpush1.xpose.msra.mxu0 %v49
    %113 = vmatprep.subr.mxu0 0.0
    %114 = vmatpush1.xpose.msra.mxu0 %v46
    %115 = vmatprep.subr.mxu0 0.0
    %116 = vmatpush1.xpose.msra.mxu0 %v43
    %117 = vmatprep.subr.mxu0 0.0
    %118 = vmatpush1.xpose.msra.mxu0 %v40
    %119 = vmatprep.subr.mxu0 0.0
    %120 = vmatpush2.xpose.msra.mxu0 0.0
    %121 = vmatprep.subr.mxu0 0.0
    %122 = vmatpush2.xpose.msra.mxu0 0.0
    %123 = vmatprep.subr.mxu0 0.0
    %124 = vmatpush2.xpose.msra.mxu0 0.0
    %125 = vmatprep.subr.mxu0 0.0
    %126 = vmatpush2.xpose.msra.mxu0 0.0
    %127 = vmatprep.subr.mxu0 0.0
    %128 = vmatpush2.xpose.msra.mxu0 0.0
    %129 = vmatprep.subr.mxu0 0.0
    %130 = vmatpush2.xpose.msra.mxu0 0.0
    %131 = vmatprep.subr.mxu0 0.0
    %132 = vmatpush2.xpose.msra.mxu0 0.0
    %133 = vmatprep.subr.mxu0 0.0
    %134 = vmatpush2.xpose.msra.mxu0 0.0
    %135 = vmatprep.subr.mxu0 0.0
    %136 = vmatpush2.xpose.msra.mxu0 0.0
    %137 = vmatprep.subr.mxu0 0.0
    %138 = vmatpush2.xpose.msra.mxu0 0.0
    %139 = vmatprep.subr.mxu0 0.0
    %140 = vmatpush2.xpose.msra.mxu0 0.0
    %141 = vmatprep.subr.mxu0 0.0
    %142 = vmatpush2.xpose.msra.mxu0 0.0
    %143 = vmatprep.subr.mxu0 0.0
    %144 = vmatpush2.xpose.msra.mxu0 0.0
    %145 = vmatprep.subr.mxu0 0.0
    %146 = vmatpush2.xpose.msra.mxu0 0.0
    %147 = vmatprep.subr.mxu0 0.0
    %148 = vmatpush2.xpose.msra.mxu0 0.0
    %149 = vmatprep.subr.mxu0 0.0
    %150 = vmatpush2.xpose.msra.mxu0 0.0
    %151 = vmatprep.mubr.f32.mxu0 0.0
    %152 = vmatmul.mubr.f32.gmra.mxu0 %v37
    %v153 = vpop.f32.mrf.mxu0
    %v154 = vadd.f32 0.0, %v153
    %v155 = vpop.f32.mrf.mxu0
    %156 = vdwg.mxu0
    %v157 = vld [vmem:[%s0] sm:$0xff]
    %v158 = vld [vmem:[%s0 + $0x8] sm:$0xff]
    %v159 = vld [vmem:[%s0 + $0x10] sm:$0xff]
    %v160 = vld [vmem:[%s0 + $0x18] sm:$0xff]
    %v161 = vld [vmem:[%s0 + $0x20] sm:$0xff]
    %v162 = vld [vmem:[%s0 + $0x28] sm:$0xff]
    %v163 = vld [vmem:[%s0 + $0x30] sm:$0xff]
    %v164 = vld [vmem:[%s0 + $0x38] sm:$0xff]
    %v165 = vmul.f32 %v157, %v154
    %v166 = vmul.f32 %v158, %v154
    %v167 = vmul.f32 %v159, %v154
    %v168 = vmul.f32 %v160, %v154
    %v169 = vmul.f32 %v161, %v154
    %v170 = vmul.f32 %v162, %v154
    %v171 = vmul.f32 %v163, %v154
    %v172 = vmul.f32 %v164, %v154
    %173 = vadd.xlane.f32.xlu0 %v165
    %v174 = vpop.xlane.xlu0 %173
    %175 = vadd.xlane.f32.xlu0 %v166
    %v176 = vpop.xlane.xlu0 %175
    %177 = vadd.xlane.f32.xlu0 %v167
    %v178 = vpop.xlane.xlu0 %177
    %179 = vadd.xlane.f32.xlu0 %v168
    %v180 = vpop.xlane.xlu0 %179
    %181 = vadd.xlane.f32.xlu0 %v169
    %v182 = vpop.xlane.xlu0 %181
    %183 = vadd.xlane.f32.xlu0 %v170
    %v184 = vpop.xlane.xlu0 %183
    %185 = vadd.xlane.f32.xlu0 %v171
    %v186 = vpop.xlane.xlu0 %185
    %187 = vadd.xlane.f32.xlu0 %v172
    %v188 = vpop.xlane.xlu0 %187
    %v197 = vlaneseq
    %v198 = vand.u32 %v197, 127
    %v199 = vlaneseq
    %v200 = vshrl.u32 %v199, 7
    %v201 = vsub.s32 %v198, %v200
    %v202 = vrot.slane %v174, %v201
    %v203 = vlaneseq
    %v204 = vshrl.u32 %v203, 7
    %v205 = vsub.s32 %v198, %v204
    %v206 = vrot.slane %v176, %v205
    %v207 = vlaneseq
    %v208 = vshrl.u32 %v207, 7
    %v209 = vsub.s32 %v198, %v208
    %v210 = vrot.slane %v178, %v209
    %v211 = vlaneseq
    %v212 = vshrl.u32 %v211, 7
    %v213 = vsub.s32 %v198, %v212
    %v214 = vrot.slane %v180, %v213
    %v215 = vlaneseq
    %v216 = vshrl.u32 %v215, 7
    %v217 = vsub.s32 %v198, %v216
    %v218 = vrot.slane %v182, %v217
    %v219 = vlaneseq
    %v220 = vshrl.u32 %v219, 7
    %v221 = vsub.s32 %v198, %v220
    %v222 = vrot.slane %v184, %v221
    %v223 = vlaneseq
    %v224 = vshrl.u32 %v223, 7
    %v225 = vsub.s32 %v198, %v224
    %v226 = vrot.slane %v186, %v225
    %v227 = vlaneseq
    %v228 = vshrl.u32 %v227, 7
    %v229 = vsub.s32 %v198, %v228
    %v230 = vrot.slane %v188, %v229
    %vm231 = vcmask 1041409
    %v232 = vsel %vm231, %v206, %v202
    %vm233 = vcmask 1042434
    %v234 = vsel %vm233, %v210, %v232
    %vm235 = vcmask 1043459
    %v236 = vsel %vm235, %v214, %v234
    %vm237 = vcmask 1044484
    %v238 = vsel %vm237, %v218, %v236
    %vm239 = vcmask 1045509
    %v240 = vsel %vm239, %v222, %v238
    %vm241 = vcmask 1046534
    %v242 = vsel %vm241, %v226, %v240
    %vm243 = vcmask 1047559
    %v244 = vsel %vm243, %v230, %v242
    %vm246 = vcmask 64512
    %247 = vst.msk [vmem:[#allocation2] sm:$0xff] %vm246, %v244
    %s248 = scalar_lea.vmem %s0, 64
    %v249 = vld [vmem:[%s248] sm:$0xff]
    %v250 = vld [vmem:[%s248 + $0x8] sm:$0xff]
    %v251 = vld [vmem:[%s248 + $0x10] sm:$0xff]
    %v252 = vld [vmem:[%s248 + $0x18] sm:$0xff]
    %v253 = vld [vmem:[%s248 + $0x20] sm:$0xff]
    %v254 = vld [vmem:[%s248 + $0x28] sm:$0xff]
    %v255 = vld [vmem:[%s248 + $0x30] sm:$0xff]
    %v256 = vld [vmem:[%s248 + $0x38] sm:$0xff]
    %v257 = vmul.f32 %v249, %v154
    %v258 = vmul.f32 %v250, %v154
    %v259 = vmul.f32 %v251, %v154
    %v260 = vmul.f32 %v252, %v154
    %v261 = vmul.f32 %v253, %v154
    %v262 = vmul.f32 %v254, %v154
    %v263 = vmul.f32 %v255, %v154
    %v264 = vmul.f32 %v256, %v154
    %265 = vadd.xlane.f32.xlu0 %v257
    %v266 = vpop.xlane.xlu0 %265
    %267 = vadd.xlane.f32.xlu0 %v258
    %v268 = vpop.xlane.xlu0 %267
    %269 = vadd.xlane.f32.xlu0 %v259
    %v270 = vpop.xlane.xlu0 %269
    %271 = vadd.xlane.f32.xlu0 %v260
    %v272 = vpop.xlane.xlu0 %271
    %273 = vadd.xlane.f32.xlu0 %v261
    %v274 = vpop.xlane.xlu0 %273
    %275 = vadd.xlane.f32.xlu0 %v262
    %v276 = vpop.xlane.xlu0 %275
    %277 = vadd.xlane.f32.xlu0 %v263
    %v278 = vpop.xlane.xlu0 %277
    %279 = vadd.xlane.f32.xlu0 %v264
    %v280 = vpop.xlane.xlu0 %279
    %v289 = vlaneseq
    %v290 = vshrl.u32 %v289, 7
    %v291 = vsub.s32 %v198, %v290
    %v292 = vrot.slane %v266, %v291
    %v293 = vlaneseq
    %v294 = vshrl.u32 %v293, 7
    %v295 = vsub.s32 %v198, %v294
    %v296 = vrot.slane %v268, %v295
    %v297 = vlaneseq
    %v298 = vshrl.u32 %v297, 7
    %v299 = vsub.s32 %v198, %v298
    %v300 = vrot.slane %v270, %v299
    %v301 = vlaneseq
    %v302 = vshrl.u32 %v301, 7
    %v303 = vsub.s32 %v198, %v302
    %v304 = vrot.slane %v272, %v303
    %v305 = vlaneseq
    %v306 = vshrl.u32 %v305, 7
    %v307 = vsub.s32 %v198, %v306
    %v308 = vrot.slane %v274, %v307
    %v309 = vlaneseq
    %v310 = vshrl.u32 %v309, 7
    %v311 = vsub.s32 %v198, %v310
    %v312 = vrot.slane %v276, %v311
    %v313 = vlaneseq
    %v314 = vshrl.u32 %v313, 7
    %v315 = vsub.s32 %v198, %v314
    %v316 = vrot.slane %v278, %v315
    %v317 = vlaneseq
    %v318 = vshrl.u32 %v317, 7
    %v319 = vsub.s32 %v198, %v318
    %v320 = vrot.slane %v280, %v319
    %v321 = vsel %vm231, %v296, %v292
    %v322 = vsel %vm233, %v300, %v321
    %v323 = vsel %vm235, %v304, %v322
    %v324 = vsel %vm237, %v308, %v323
    %v325 = vsel %vm239, %v312, %v324
    %v326 = vsel %vm241, %v316, %v325
    %v327 = vsel %vm243, %v320, %v326
    %329 = vst.msk [vmem:[#allocation2 + $0x8] sm:$0xff] %vm246, %v327
    %v330 = vld [vmem:[#allocation2] sm:$0xff]
    %v331 = vld [vmem:[#allocation2 + $0x8] sm:$0xff]
    %v332 = vsel %vm246, %v330, -inf
    %v333 = vsel %vm246, %v331, -inf
    %v334 = vmax.f32 %v332, %v333
    %v335 = vrot.slane %v334, 4
    %v336 = vmax.f32 %v334, %v335
    %v337 = vrot.slane %v336, 2
    %v338 = vmax.f32 %v336, %v337
    %v339 = vrot.slane %v338, 1
    %v340 = vmax.f32 %v338, %v339
    %v341 = vsub.f32 %v330, %v340
    %v342 = vsub.f32 %v331, %v340
    %v343 = vmul.f32 %v341, 1.442695
    %v344 = vpow.pop %v343
    %v345 = vmul.f32 %v342, 1.442695
    %v346 = vpow.pop %v345
    %v347 = vsel %vm246, %v344, 0.0
    %v348 = vsel %vm246, %v346, 0.0
    %v349 = vadd.f32 %v347, %v348
    %v350 = vrot.slane %v349, 4
    %v351 = vadd.f32 %v349, %v350
    %v352 = vrot.slane %v351, 2
    %v353 = vadd.f32 %v351, %v352
    %v354 = vrot.slane %v353, 1
    %v355 = vadd.f32 %v353, %v354
    %v356 = vrcp.pop %v355
    %v357 = vmul.f32 %v344, %v356
    %v358 = vmul.f32 %v346, %v356
    %v359 = vld [vmem:[%s0] sm:$0xff]
    %v360 = vld [vmem:[%s0 + $0x8] sm:$0xff]
    %v361 = vld [vmem:[%s0 + $0x10] sm:$0xff]
    %v362 = vld [vmem:[%s0 + $0x18] sm:$0xff]
    %v363 = vld [vmem:[%s0 + $0x20] sm:$0xff]
    %v364 = vld [vmem:[%s0 + $0x28] sm:$0xff]
    %v365 = vld [vmem:[%s0 + $0x30] sm:$0xff]
    %v366 = vld [vmem:[%s0 + $0x38] sm:$0xff]
    %v367 = vlaneseq
    %v368 = vshrl.u32 %v367, 7
    %v369 = vsub.s32 0, %v368
    %v370 = vrot.slane %v357, %v369
    %372 = vbcast.lane.b32.xlu0 %v370, 256
    %v373 = vpop.permute.xlu0 %372
    %v374 = vlaneseq
    %v375 = vshrl.u32 %v374, 7
    %v376 = vsub.s32 1, %v375
    %v377 = vrot.slane %v357, %v376
    %379 = vbcast.lane.b32.xlu0 %v377, 256
    %v380 = vpop.permute.xlu0 %379
    %v381 = vlaneseq
    %v382 = vshrl.u32 %v381, 7
    %v383 = vsub.s32 2, %v382
    %v384 = vrot.slane %v357, %v383
    %386 = vbcast.lane.b32.xlu0 %v384, 256
    %v387 = vpop.permute.xlu0 %386
    %v388 = vlaneseq
    %v389 = vshrl.u32 %v388, 7
    %v390 = vsub.s32 3, %v389
    %v391 = vrot.slane %v357, %v390
    %393 = vbcast.lane.b32.xlu0 %v391, 256
    %v394 = vpop.permute.xlu0 %393
    %v395 = vlaneseq
    %v396 = vshrl.u32 %v395, 7
    %v397 = vsub.s32 4, %v396
    %v398 = vrot.slane %v357, %v397
    %400 = vbcast.lane.b32.xlu0 %v398, 256
    %v401 = vpop.permute.xlu0 %400
    %v402 = vlaneseq
    %v403 = vshrl.u32 %v402, 7
    %v404 = vsub.s32 5, %v403
    %v405 = vrot.slane %v357, %v404
    %407 = vbcast.lane.b32.xlu0 %v405, 256
    %v408 = vpop.permute.xlu0 %407
    %v409 = vlaneseq
    %v410 = vshrl.u32 %v409, 7
    %v411 = vsub.s32 6, %v410
    %v412 = vrot.slane %v357, %v411
    %414 = vbcast.lane.b32.xlu0 %v412, 256
    %v415 = vpop.permute.xlu0 %414
    %v416 = vlaneseq
    %v417 = vshrl.u32 %v416, 7
    %v418 = vsub.s32 7, %v417
    %v419 = vrot.slane %v357, %v418
    %421 = vbcast.lane.b32.xlu0 %v419, 256
    %v422 = vpop.permute.xlu0 %421
    %v423 = vmul.f32 %v373, %v359
    %v424 = vmul.f32 %v380, %v360
    %v425 = vmul.f32 %v387, %v361
    %v426 = vmul.f32 %v394, %v362
    %v427 = vmul.f32 %v401, %v363
    %v428 = vmul.f32 %v408, %v364
    %v429 = vmul.f32 %v415, %v365
    %v430 = vmul.f32 %v422, %v366
    %v431 = vadd.f32 %v423, %v424
    %v432 = vadd.f32 %v431, %v425
    %v433 = vadd.f32 %v432, %v426
    %v434 = vadd.f32 %v433, %v427
    %v435 = vadd.f32 %v434, %v428
    %v436 = vadd.f32 %v435, %v429
    %v437 = vadd.f32 %v436, %v430
    %v438 = vadd.f32 %v437, 0.0
    %v439 = vld [vmem:[%s248] sm:$0xff]
    %v440 = vld [vmem:[%s248 + $0x8] sm:$0xff]
    %v441 = vld [vmem:[%s248 + $0x10] sm:$0xff]
    %v442 = vld [vmem:[%s248 + $0x18] sm:$0xff]
    %v443 = vld [vmem:[%s248 + $0x20] sm:$0xff]
    %v444 = vld [vmem:[%s248 + $0x28] sm:$0xff]
    %v445 = vld [vmem:[%s248 + $0x30] sm:$0xff]
    %v446 = vld [vmem:[%s248 + $0x38] sm:$0xff]
    %v447 = vlaneseq
    %v448 = vshrl.u32 %v447, 7
    %v449 = vsub.s32 0, %v448
    %v450 = vrot.slane %v358, %v449
    %452 = vbcast.lane.b32.xlu0 %v450, 256
    %v453 = vpop.permute.xlu0 %452
    %v454 = vlaneseq
    %v455 = vshrl.u32 %v454, 7
    %v456 = vsub.s32 1, %v455
    %v457 = vrot.slane %v358, %v456
    %459 = vbcast.lane.b32.xlu0 %v457, 256
    %v460 = vpop.permute.xlu0 %459
    %v461 = vlaneseq
    %v462 = vshrl.u32 %v461, 7
    %v463 = vsub.s32 2, %v462
    %v464 = vrot.slane %v358, %v463
    %466 = vbcast.lane.b32.xlu0 %v464, 256
    %v467 = vpop.permute.xlu0 %466
    %v468 = vlaneseq
    %v469 = vshrl.u32 %v468, 7
    %v470 = vsub.s32 3, %v469
    %v471 = vrot.slane %v358, %v470
    %473 = vbcast.lane.b32.xlu0 %v471, 256
    %v474 = vpop.permute.xlu0 %473
    %v475 = vlaneseq
    %v476 = vshrl.u32 %v475, 7
    %v477 = vsub.s32 4, %v476
    %v478 = vrot.slane %v358, %v477
    %480 = vbcast.lane.b32.xlu0 %v478, 256
    %v481 = vpop.permute.xlu0 %480
    %v482 = vlaneseq
    %v483 = vshrl.u32 %v482, 7
    %v484 = vsub.s32 5, %v483
    %v485 = vrot.slane %v358, %v484
    %487 = vbcast.lane.b32.xlu0 %v485, 256
    %v488 = vpop.permute.xlu0 %487
    %v489 = vlaneseq
    %v490 = vshrl.u32 %v489, 7
    %v491 = vsub.s32 6, %v490
    %v492 = vrot.slane %v358, %v491
    %494 = vbcast.lane.b32.xlu0 %v492, 256
    %v495 = vpop.permute.xlu0 %494
    %v496 = vlaneseq
    %v497 = vshrl.u32 %v496, 7
    %v498 = vsub.s32 7, %v497
    %v499 = vrot.slane %v358, %v498
    %501 = vbcast.lane.b32.xlu0 %v499, 256
    %v502 = vpop.permute.xlu0 %501
    %v503 = vmul.f32 %v453, %v439
    %v504 = vmul.f32 %v460, %v440
    %v505 = vmul.f32 %v467, %v441
    %v506 = vmul.f32 %v474, %v442
    %v507 = vmul.f32 %v481, %v443
    %v508 = vmul.f32 %v488, %v444
    %v509 = vmul.f32 %v495, %v445
    %v510 = vmul.f32 %v502, %v446
    %v511 = vadd.f32 %v503, %v504
    %v512 = vadd.f32 %v511, %v505
    %v513 = vadd.f32 %v512, %v506
    %v514 = vadd.f32 %v513, %v507
    %v515 = vadd.f32 %v514, %v508
    %v516 = vadd.f32 %v515, %v509
    %v517 = vadd.f32 %v516, %v510
    %v518 = vadd.f32 %v438, %v517
    %519 = vst [vmem:[#allocation3] sm:$0xff] %v518
    %520 = vxpose.xlu0.b32.start [1/16] %v357, 128
    %521 = vxpose.xlu0.b32.cont [2/16] %v358, 128
    %522 = vxpose.xlu0.b32.cont [3/16] 0.0, 128
    %523 = vxpose.xlu0.b32.cont [4/16] 0.0, 128
    %524 = vxpose.xlu0.b32.cont [5/16] 0.0, 128
    %525 = vxpose.xlu0.b32.cont [6/16] 0.0, 128
    %526 = vxpose.xlu0.b32.cont [7/16] 0.0, 128
    %527 = vxpose.xlu0.b32.cont [8/16] 0.0, 128
    %528 = vxpose.xlu0.b32.cont [9/16] 0.0, 128
    %529 = vxpose.xlu0.b32.cont [10/16] 0.0, 128
    %530 = vxpose.xlu0.b32.cont [11/16] 0.0, 128
    %531 = vxpose.xlu0.b32.cont [12/16] 0.0, 128
    %532 = vxpose.xlu0.b32.cont [13/16] 0.0, 128
    %533 = vxpose.xlu0.b32.cont [14/16] 0.0, 128
    %534 = vxpose.xlu0.b32.cont [15/16] 0.0, 128
    %535 = vxpose.xlu0.b32.end [16/16] 0.0, 128
    %v536 = vpop.trf.xlu0
    %v537 = vpop.trf.xlu0
    %v538 = vpop.trf.xlu0
    %v539 = vpop.trf.xlu0
    %v540 = vpop.trf.xlu0
    %v541 = vpop.trf.xlu0
    %v542 = vpop.trf.xlu0
    %v543 = vpop.trf.xlu0
    %v544 = vpop.trf.xlu0
    %v545 = vpop.trf.xlu0
    %v546 = vpop.trf.xlu0
    %v547 = vpop.trf.xlu0
    %v548 = vpop.trf.xlu0
    %v549 = vpop.trf.xlu0
    %v550 = vpop.trf.xlu0
    %v551 = vpop.trf.xlu0
    %vm552 = vcmask 130048
    %553 = vst.msk [vmem:[#allocation5] sm:$0xff] %vm552, %v536
    // Predicated region
    $region14: #{tpu_custom_call.1} parent=1 // pred_check
      _
    $region15: #{tpu_custom_call.1} parent=1 // pred_check_branch
      %555 = sbr.rel (0) target = $region17
    $region16: #{tpu_custom_call.1} parent=1 // pred_region
      %s557 = ssub.s32 128, 128
      %558 = vsyncadd [#allocation4], %s557
      %s560 = sshll.u32 [#allocation3], 4
      %s561 = int_to_ptr.vmem [resolvable:$true] %s560
      %563 = dma.vmem_to_hbm [thread:$0]  %s561, 128, %s3, [#allocation4]
    $region17: #{tpu_custom_call.1} parent=1 // pred_fallthru
      _
    // Predicated region
    $region18: #{tpu_custom_call.1} parent=1 // pred_check
      _
    $region19: #{tpu_custom_call.1} parent=1 // pred_check_branch
      %565 = sbr.rel (0) target = $region21
    $region20: #{tpu_custom_call.1} parent=1 // pred_region
      %s567 = ssub.s32 128, 128
      %568 = vsyncadd [#allocation6], %s567
      %s570 = sshll.u32 [#allocation5], 4
      %s571 = int_to_ptr.vmem [resolvable:$true] %s570
      %573 = dma.vmem_to_hbm [thread:$0]  %s571, 128, %s4, [#allocation6]
    $region21: #{tpu_custom_call.1} parent=1 // pred_fallthru
      _
    // Predicated region
    $region22: #{tpu_custom_call.1} parent=1 // pred_check
      _
    $region23: #{tpu_custom_call.1} parent=1 // pred_check_branch
      %575 = sbr.rel (0) target = $region25
    $region24: #{tpu_custom_call.1} parent=1 // pred_region
      %576 = dma.done [#allocation4], 128
    $region25: #{tpu_custom_call.1} parent=1 // pred_fallthru
      _
    // Predicated region
    $region26: #{tpu_custom_call.1} parent=1 // pred_check
      _
    $region27: #{tpu_custom_call.1} parent=1 // pred_check_branch
      %578 = sbr.rel (0) target = $region29
    $region28: #{tpu_custom_call.1} parent=1 // pred_region
      %579 = dma.done [#allocation6], 128
    $region29: #{tpu_custom_call.1} parent=1 // pred_fallthru
      _
    %580 = vsyncpa [#allocation4], 1
    %581 = vsyncpa [#allocation6], 1

</llo_original>
